<compile_context>
chip_gen: v7x
topology: tpu7x:2x2x1
jax: 0.10.0
libtpu: 0.0.40
codegen_flags: <defaults>
</compile_context>

<pallas_src>
import functools

import jax
import jax.numpy as jnp
from jax.experimental import pallas as pl
from jax.experimental.pallas import tpu as pltpu

EPS = 1e-10
_LANE = 128
_SUBLANE = 8
# ~4 MiB VMEM footprint per block (last dim rounded up to the 128-lane tile
# when accounting VMEM, since narrow last dims still occupy full lane tiles).
# Double-buffered input + output blocks => ~4x this in flight, well under the
# 32 MiB scoped-VMEM limit we request below.
_TARGET_BLOCK_BYTES = 4 << 20
_MAX_TILE_ROWS = 8192
_VMEM_LIMIT_BYTES = 32 << 20


def _round_up(n, m):
    return ((n + m - 1) // m) * m


def _choose_tile_r(n_rows, t):
    # VMEM footprint per row is lane-padded to a multiple of 128 (f32).
    lane_t = _round_up(max(t, 1), _LANE)
    rows = _TARGET_BLOCK_BYTES // (lane_t * 4)
    rows = max(_SUBLANE, (rows // _SUBLANE) * _SUBLANE)
    rows = min(rows, _MAX_TILE_ROWS)
    # Keep >= 2 grid steps whenever possible so dimension_semantics=("parallel",)
    # can shard rows across v7x's two TensorCores (harmless on 1-TC v5e/v6e).
    if n_rows > _SUBLANE:
        half = _round_up(pl.cdiv(n_rows, 2), _SUBLANE)
        rows = min(rows, half)
    rows = min(rows, _round_up(n_rows, _SUBLANE))
    return max(rows, _SUBLANE)
    # TODO(synk): for extremely long T (a single (8, T) f32 block exceeding the
    # 32 MiB working-set budget, i.e. T >~ 250K) add a chunked-T "arbitrary"
    # grid axis with f32 sum / sum-of-squares accumulators (var clamped at 0)
    # instead of keeping T whole per block; matters only on v7x (64 MiB VMEM).


def _ts_scaler_norm_kernel(x_ref, y_ref, mean_ref, fac_ref, *, inv_t):
    # x_ref: (tile_r, T) — each row is one full time series (no padding).
    x = x_ref[...].astype(jnp.float32)
    inv_t = jnp.float32(inv_t)
    mean = jnp.sum(x, axis=-1, keepdims=True) * inv_t
    d = x - mean                                    # reused for var AND output
    var = jnp.sum(d * d, axis=-1, keepdims=True) * inv_t
    std = jnp.sqrt(var)                             # population std (unbiased=False)
    fac = jnp.sqrt(std) + EPS                       # sqrt(std): the module's quirk
    # EUP approximate reciprocal on the tiny (tile_r, 1) vector + one
    # Newton-Raphson refinement -> ~f32-exact 1/fac at negligible cost,
    # instead of T full-tile divides per row.
    inv_fac = pl.reciprocal(fac, approx=True)
    inv_fac = inv_fac * (jnp.float32(2.0) - fac * inv_fac)
    y_ref[...] = (d * inv_fac).astype(y_ref.dtype)
    mean_ref[...] = mean.astype(mean_ref.dtype)
    fac_ref[...] = fac.astype(fac_ref.dtype)


def _ts_scaler_upscale_kernel(x_ref, mean_ref, fac_ref, y_ref):
    # Hoist the (tile_r, 1) reads once; broadcasts ride the multiply/add.
    m = mean_ref[...].astype(jnp.float32)
    f = fac_ref[...].astype(jnp.float32)
    x = x_ref[...].astype(jnp.float32)
    y_ref[...] = (x * f + m).astype(y_ref.dtype)


def ts_scaler_normalize(x):
    """x: (B, C, T) -> (normalized (B,C,T), means (B,C,1), factors (B,C,1))."""
    B, C, T = x.shape
    R = B * C
    x2d = x.reshape(R, T)

    tile_r = _choose_tile_r(R, T)
    grid = (pl.cdiv(R, tile_r),)

    kernel = functools.partial(_ts_scaler_norm_kernel, inv_t=1.0 / T)
    y, means, facs = pl.pallas_call(
        kernel,
        out_shape=(
            jax.ShapeDtypeStruct((R, T), x.dtype),
            jax.ShapeDtypeStruct((R, 1), jnp.float32),
            jax.ShapeDtypeStruct((R, 1), jnp.float32),
        ),
        grid_spec=pltpu.PrefetchScalarGridSpec(
            num_scalar_prefetch=0,
            grid=grid,
            in_specs=[pl.BlockSpec((tile_r, T), lambda i: (i, 0))],
            out_specs=[
                pl.BlockSpec((tile_r, T), lambda i: (i, 0)),
                pl.BlockSpec((tile_r, 1), lambda i: (i, 0)),
                pl.BlockSpec((tile_r, 1), lambda i: (i, 0)),
            ],
        ),
        compiler_params=pltpu.CompilerParams(
            dimension_semantics=("parallel",),
            vmem_limit_bytes=_VMEM_LIMIT_BYTES),
        cost_estimate=pl.CostEstimate(
            flops=5 * R * T,
            transcendentals=3 * R,
            bytes_accessed=2 * R * T * 4 + 2 * R * 4),
    )(x2d)

    return (y.reshape(B, C, T),
            means.reshape(B, C, 1),
            facs.reshape(B, C, 1))


def ts_scaler_upscale(x, means, factors):
    """Inverse transform (normalize=False, 3-D path): x * factors + means."""
    B, C, T = x.shape
    R = B * C
    x2d = x.reshape(R, T)
    m2d = means.reshape(R, 1).astype(jnp.float32)
    f2d = factors.reshape(R, 1).astype(jnp.float32)

    tile_r = _choose_tile_r(R, T)
    grid = (pl.cdiv(R, tile_r),)

    y = pl.pallas_call(
        _ts_scaler_upscale_kernel,
        out_shape=jax.ShapeDtypeStruct((R, T), x.dtype),
        grid_spec=pltpu.PrefetchScalarGridSpec(
            num_scalar_prefetch=0,
            grid=grid,
            in_specs=[
                pl.BlockSpec((tile_r, T), lambda i: (i, 0)),
                pl.BlockSpec((tile_r, 1), lambda i: (i, 0)),
                pl.BlockSpec((tile_r, 1), lambda i: (i, 0)),
            ],
            out_specs=pl.BlockSpec((tile_r, T), lambda i: (i, 0)),
        ),
        compiler_params=pltpu.CompilerParams(
            dimension_semantics=("parallel",),
            vmem_limit_bytes=_VMEM_LIMIT_BYTES),
        cost_estimate=pl.CostEstimate(
            flops=2 * R * T,
            transcendentals=0,
            bytes_accessed=2 * R * T * 4 + 2 * R * 4),
    )(x2d, m2d, f2d)
    return y.reshape(B, C, T)


def _reference_normalize(x):
    means = jnp.mean(x, axis=-1, keepdims=True)
    std = jnp.sqrt(jnp.mean((x - means) ** 2, axis=-1, keepdims=True))
    factors = jnp.sqrt(std) + EPS
    return (x - means) / factors, means, factors


def _check_case(key, B, C, T):
    x = jax.random.normal(key, (B, C, T), dtype=jnp.float32) * 3.0 + 1.5

    # normalize=True path (the forward pass)
    y, means, factors = ts_scaler_normalize(x)
    jax.block_until_ready(y)

    y_ref, m_ref, f_ref = _reference_normalize(x)
    assert jnp.allclose(means, m_ref, atol=1e-5), "means mismatch"
    assert jnp.allclose(factors, f_ref, atol=1e-5), "factors mismatch"
    # Newton-refined reciprocal -> near f32-exact normalize.
    assert jnp.allclose(y, y_ref, atol=1e-4, rtol=1e-4), "normalize mismatch"

    # normalize=False path (upscale): exact against its own jnp reference...
    x_back = ts_scaler_upscale(y, means, factors)
    jax.block_until_ready(x_back)
    up_ref = y * factors + means
    assert jnp.allclose(x_back, up_ref, atol=1e-5, rtol=1e-5), "upscale mismatch"
    # ...and a round-trip sanity check back to x.
    assert jnp.allclose(x_back, x, atol=1e-2, rtol=1e-3), "round-trip mismatch"


if __name__ == "__main__":
    key = jax.random.PRNGKey(0)
    k1, k2 = jax.random.split(key)

    # Small shape consistent with the module: (batch=2, channels=4, time=16).
    _check_case(k1, 2, 4, 16)
    # Second case exercising a ragged last row block (R=15) and non-128 T.
    _check_case(k2, 3, 5, 100)

    # TODO(synk): the module's 4-D upscale branch contains a bug
    # (`means = factors[..., None]`); only the documented 3-D path is implemented.

    print("KERNEL_OK")
</pallas_src>

<mosaic_0001>
module attributes {stable_mosaic.version = 11 : i64} {
  func.func @_ts_scaler_norm_kernel(%arg0: i32, %arg1: memref<8x16xf32, #tpu.memory_space<vmem>>, %arg2: memref<8x16xf32, #tpu.memory_space<vmem>>, %arg3: memref<8x1xf32, #tpu.memory_space<vmem>>, %arg4: memref<8x1xf32, #tpu.memory_space<vmem>>) attributes {dimension_semantics = [#tpu.dimension_semantics<parallel>], iteration_bounds = array<i64: 1>, scalar_prefetch = 0 : i64, scratch_operands = 0 : i64, tpu.core_type = #tpu.core_type<tc>, window_params = [{transform_indices = @transform_0, window_bounds = array<i64: 8, 16>}, {transform_indices = @transform_1, window_bounds = array<i64: 8, 16>}, {transform_indices = @transform_2, window_bounds = array<i64: 8, 1>}, {transform_indices = @transform_3, window_bounds = array<i64: 8, 1>}]} {
    %c0 = arith.constant 0 : index
    %c0_0 = arith.constant 0 : index
    %0 = vector.load %arg1[%c0, %c0_0] : memref<8x16xf32, #tpu.memory_space<vmem>>, vector<8x16xf32>
    %cst = arith.constant dense<0.000000e+00> : vector<8xf32>
    %1 = vector.multi_reduction <add>, %0, %cst [1] : vector<8x16xf32> to vector<8xf32>
    %2 = vector.shape_cast %1 : vector<8xf32> to vector<8x1xf32>
    %cst_1 = arith.constant 6.250000e-02 : f32
    %3 = vector.broadcast %cst_1 : f32 to vector<8x1xf32>
    %4 = arith.mulf %2, %3 : vector<8x1xf32>
    %5 = vector.broadcast %4 : vector<8x1xf32> to vector<8x16xf32>
    %6 = arith.subf %0, %5 : vector<8x16xf32>
    %7 = arith.mulf %6, %6 : vector<8x16xf32>
    %cst_2 = arith.constant dense<0.000000e+00> : vector<8xf32>
    %8 = vector.multi_reduction <add>, %7, %cst_2 [1] : vector<8x16xf32> to vector<8xf32>
    %9 = vector.shape_cast %8 : vector<8xf32> to vector<8x1xf32>
    %cst_3 = arith.constant 6.250000e-02 : f32
    %10 = vector.broadcast %cst_3 : f32 to vector<8x1xf32>
    %11 = arith.mulf %9, %10 : vector<8x1xf32>
    %12 = math.sqrt %11 : vector<8x1xf32>
    %13 = math.sqrt %12 : vector<8x1xf32>
    %cst_4 = arith.constant 1.000000e-10 : f32
    %14 = vector.broadcast %cst_4 : f32 to vector<8x1xf32>
    %15 = arith.addf %13, %14 : vector<8x1xf32>
    %16 = tpu.reciprocal %15 {approx = true} : vector<8x1xf32> -> vector<8x1xf32>
    %17 = arith.mulf %15, %16 : vector<8x1xf32>
    %cst_5 = arith.constant 2.000000e+00 : f32
    %18 = vector.broadcast %cst_5 : f32 to vector<8x1xf32>
    %19 = arith.subf %18, %17 : vector<8x1xf32>
    %20 = arith.mulf %16, %19 : vector<8x1xf32>
    %21 = vector.broadcast %20 : vector<8x1xf32> to vector<8x16xf32>
    %22 = arith.mulf %6, %21 : vector<8x16xf32>
    %c0_6 = arith.constant 0 : index
    %c0_7 = arith.constant 0 : index
    %23 = vector.load %arg2[%c0_6, %c0_7] : memref<8x16xf32, #tpu.memory_space<vmem>>, vector<8x16xf32>
    tpu.vector_store %arg2[%c0_6, %c0_7], %22 {strides = array<i32>} : memref<8x16xf32, #tpu.memory_space<vmem>>, vector<8x16xf32>,
    %c0_8 = arith.constant 0 : index
    %c0_9 = arith.constant 0 : index
    %24 = vector.load %arg3[%c0_8, %c0_9] : memref<8x1xf32, #tpu.memory_space<vmem>>, vector<8x1xf32>
    tpu.vector_store %arg3[%c0_8, %c0_9], %4 {strides = array<i32>} : memref<8x1xf32, #tpu.memory_space<vmem>>, vector<8x1xf32>,
    %c0_10 = arith.constant 0 : index
    %c0_11 = arith.constant 0 : index
    %25 = vector.load %arg4[%c0_10, %c0_11] : memref<8x1xf32, #tpu.memory_space<vmem>>, vector<8x1xf32>
    tpu.vector_store %arg4[%c0_10, %c0_11], %15 {strides = array<i32>} : memref<8x1xf32, #tpu.memory_space<vmem>>, vector<8x1xf32>,
    return
  }
  func.func @transform_0(%arg0: i32) -> (i32, i32) {
    %c0_i32 = arith.constant 0 : i32
    %c0_i32_0 = arith.constant 0 : i32
    return %arg0, %c0_i32 : i32, i32
  }
  func.func @transform_1(%arg0: i32) -> (i32, i32) {
    %c0_i32 = arith.constant 0 : i32
    %c0_i32_0 = arith.constant 0 : i32
    return %arg0, %c0_i32 : i32, i32
  }
  func.func @transform_2(%arg0: i32) -> (i32, i32) {
    %c0_i32 = arith.constant 0 : i32
    %c0_i32_0 = arith.constant 0 : i32
    return %arg0, %c0_i32 : i32, i32
  }
  func.func @transform_3(%arg0: i32) -> (i32, i32) {
    %c0_i32 = arith.constant 0 : i32
    %c0_i32_0 = arith.constant 0 : i32
    return %arg0, %c0_i32 : i32, i32
  }
}

</mosaic_0001>

<llo_original>
// kernel: tpu_custom_call.1
$region0: #{tpu_custom_call.1}
  #allocation0 [shape = 'u32[]', space=smem, size = 0x4, offset = 0x4, fixed_abs, tag = 'smem constant byte address 0x4 - core index']
  #allocation1 [shape = 'u32[144,128]{1,0:T(1,128)}', space=vmem, size = 0x12000, scoped, tag = 'internal scratch']
  %s0 = inlined_call_operand.hbm [shape: f32[8,16], index: 0, kind: input, shape index: {}]
  %s1 = inlined_call_operand.hbm [shape: f32[8,16], index: 1, kind: output, shape index: {0}]
  %s2 = inlined_call_operand.vmem [shape: f32[8,1], index: 2, kind: output, shape index: {1}]
  %s3 = inlined_call_operand.vmem [shape: f32[8,1], index: 3, kind: output, shape index: {2}]
  %4 = xla_tuple %s1, %s2, %s3
  %s5 = sld [smem:[#allocation0]]
  $region34: #{tpu_custom_call.1} parent=0
    _
  %s7 = ssub.s32 1, %s5
  %s8 = scalar_select 0, %s7, %s5
  $region1: #{tpu_custom_call.1} parent=0
    #allocation2 [shape = 'u8[4096]{0}', space=vmem, size = 0x1000, scoped, tag = 'input window, operand 0, single buffered']
    #allocation3 [shape = 's32[1]{0}', space=sflag, size = 0x4, scoped, tag = 'scoped memory for tpu_custom_call.1']
    #allocation4 [shape = 's32[1]{0}', space=sflag, size = 0x4, scoped, tag = 'scoped memory for tpu_custom_call.1']
    #allocation5 [shape = 'u8[4096]{0}', space=vmem, size = 0x1000, scoped, tag = 'output window, operand 0, single buffered']
    %9 = vsyncpa [#allocation3], 0
    %10 = vsyncpa [#allocation4], 0
    // Predicated region
    $region2: #{tpu_custom_call.1} parent=1 // pred_check
      _
    $region3: #{tpu_custom_call.1} parent=1 // pred_check_branch
      %12 = sbr.rel (0) target = $region5
    $region4: #{tpu_custom_call.1} parent=1 // pred_region
      %s14 = ssub.s32 128, 128
      %15 = vsyncadd [#allocation3], %s14
      %s17 = sshll.u32 [#allocation2], 4
      %s18 = int_to_ptr.vmem [resolvable:$true] %s17
      %20 = dma.hbm_to_vmem [thread:$0]  %s0, 128, %s18, [#allocation3]
    $region5: #{tpu_custom_call.1} parent=1 // pred_fallthru
      _
    // Predicated region
    $region6: #{tpu_custom_call.1} parent=1 // pred_check
      _
    $region7: #{tpu_custom_call.1} parent=1 // pred_check_branch
      %22 = sbr.rel (0) target = $region9
    $region8: #{tpu_custom_call.1} parent=1 // pred_region
      %23 = dma.done [#allocation3], 128
    $region9: #{tpu_custom_call.1} parent=1 // pred_fallthru
      _
    %v24 = vld [vmem:[#allocation2] sm:$0xff]
    %vm25 = vcmask 130048
    %v26 = vsel %vm25, %v24, 0.0
    %27 = vadd.xlane.f32.xlu0 %v26
    %v28 = vpop.xlane.xlu0 %27
    %v29 = vmul.f32 %v28, 0.0625
    %v30 = vsub.f32 %v24, %v29
    %v31 = vmul.f32 %v30, %v30
    %v32 = vsel %vm25, %v31, 0.0
    %33 = vadd.xlane.f32.xlu0 %v32
    %v34 = vpop.xlane.xlu0 %33
    %v35 = vmul.f32 %v34, 0.0625
    %v36 = vrsqrt.pop %v35
    %v37 = vmul.f32 %v35, %v36
    %vm38 = vcmp.eq.f32.partialorder %v35, inf
    %v39 = vsel %vm38, %v35, %v37
    %vm40 = vcmp.eq.f32.partialorder %v35, 0.0
    %v41 = vand.u32 %v35, 2147483648
    %v42 = vsel %vm40, %v41, %v39
    %v43 = vrsqrt.pop %v42
    %v44 = vmul.f32 %v42, %v43
    %vm45 = vcmp.eq.f32.partialorder %v42, inf
    %v46 = vsel %vm45, %v42, %v44
    %vm47 = vcmp.eq.f32.partialorder %v42, 0.0
    %v48 = vand.u32 %v42, 2147483648
    %v49 = vsel %vm47, %v48, %v46
    %v50 = vadd.f32 %v49, 1e-10
    %v51 = vrcp.pop %v50
    %v52 = vmul.f32 %v50, %v51
    %v53 = vsub.f32 2.0, %v52
    %v54 = vmul.f32 %v51, %v53
    %v55 = vmul.f32 %v30, %v54
    %56 = vst.msk [vmem:[#allocation5] sm:$0xff] %vm25, %v55
    %vm57 = vcmask 7168
    %58 = vst.msk [vmem:[%s2] sm:$0xff] %vm57, %v29
    %59 = vst.msk [vmem:[%s3] sm:$0xff] %vm57, %v50
    // Predicated region
    $region10: #{tpu_custom_call.1} parent=1 // pred_check
      _
    $region11: #{tpu_custom_call.1} parent=1 // pred_check_branch
      %61 = sbr.rel (0) target = $region13
    $region12: #{tpu_custom_call.1} parent=1 // pred_region
      %s63 = ssub.s32 128, 128
      %64 = vsyncadd [#allocation4], %s63
      %s66 = sshll.u32 [#allocation5], 4
      %s67 = int_to_ptr.vmem [resolvable:$true] %s66
      %69 = dma.vmem_to_hbm [thread:$0]  %s67, 128, %s1, [#allocation4]
    $region13: #{tpu_custom_call.1} parent=1 // pred_fallthru
      _
    // Predicated region
    $region14: #{tpu_custom_call.1} parent=1 // pred_check
      _
    $region15: #{tpu_custom_call.1} parent=1 // pred_check_branch
      %71 = sbr.rel (0) target = $region17
    $region16: #{tpu_custom_call.1} parent=1 // pred_region
      _
    $region17: #{tpu_custom_call.1} parent=1 // pred_fallthru
      _
    // Predicated region
    $region18: #{tpu_custom_call.1} parent=1 // pred_check
      _
    $region19: #{tpu_custom_call.1} parent=1 // pred_check_branch
      %73 = sbr.rel (0) target = $region21
    $region20: #{tpu_custom_call.1} parent=1 // pred_region
      _
    $region21: #{tpu_custom_call.1} parent=1 // pred_fallthru
      _
    // Predicated region
    $region22: #{tpu_custom_call.1} parent=1 // pred_check
      _
    $region23: #{tpu_custom_call.1} parent=1 // pred_check_branch
      %75 = sbr.rel (0) target = $region25
    $region24: #{tpu_custom_call.1} parent=1 // pred_region
      %76 = dma.done [#allocation4], 128
    $region25: #{tpu_custom_call.1} parent=1 // pred_fallthru
      _
    // Predicated region
    $region26: #{tpu_custom_call.1} parent=1 // pred_check
      _
    $region27: #{tpu_custom_call.1} parent=1 // pred_check_branch
      %78 = sbr.rel (0) target = $region29
    $region28: #{tpu_custom_call.1} parent=1 // pred_region
      _
    $region29: #{tpu_custom_call.1} parent=1 // pred_fallthru
      _
    // Predicated region
    $region30: #{tpu_custom_call.1} parent=1 // pred_check
      _
    $region31: #{tpu_custom_call.1} parent=1 // pred_check_branch
      %80 = sbr.rel (0) target = $region33
    $region32: #{tpu_custom_call.1} parent=1 // pred_region
      _
    $region33: #{tpu_custom_call.1} parent=1 // pred_fallthru
      _
    %81 = vsyncpa [#allocation3], 1
    %82 = vsyncpa [#allocation4], 1

</llo_original>
